<compile_context>
chip_gen: v7x
topology: tpu7x:2x2x1
jax: 0.10.0
libtpu: 0.0.40
codegen_flags: <defaults>
</compile_context>

<pallas_src>
import jax
import jax.numpy as jnp
from jax.experimental import pallas as pl
from jax.experimental.pallas import tpu as pltpu


_TILE_N_CAP = 16384   # per-step node tile ceiling (review: 8k-16k amortizes per-step cost)
_SPLIT_MIN_N = 4096   # above this, prefer >= 2 grid steps (keeps both v7x TCs busy)


def _linear_kernel(wt_ref, b_ref, x_ref, y_ref):
    # wt_ref: (d_in, d_out)   VMEM-resident transposed weight (compute dtype)
    # b_ref : (1, d_out)      VMEM-resident f32 bias row
    # x_ref : (tile_n, d_in)  streamed node tile at the caller's dtype
    # y_ref : (tile_n, d_out) streamed output tile
    x = x_ref[...].astype(wt_ref.dtype)  # in-kernel cast; VPU work hidden under DMA
    acc = jnp.dot(x, wt_ref[...], preferred_element_type=jnp.float32)
    y_ref[...] = (acc + b_ref[...]).astype(y_ref.dtype)


def _gen_aware_vmem():
    """Return (tile VMEM budget, compiler vmem_limit_bytes) sized per TPU generation."""
    try:
        phys = pltpu.get_tpu_info().vmem_capacity_bytes
    except Exception:
        phys = 64 * 1024 * 1024  # conservative fallback: v7x per-TensorCore VMEM
    if phys >= 96 * 1024 * 1024:                      # v5e / v6e: 128 MiB physical
        return 24 * 1024 * 1024, 64 * 1024 * 1024
    return 16 * 1024 * 1024, 48 * 1024 * 1024         # v7x: 64 MiB per TC


def _choose_tile_n(n, d_in, d_out, x_itemsize, out_itemsize, vmem_budget_bytes):
    """Node-axis tile: multiple of 8 (sublane), capped by a double-buffered VMEM
    budget (2x input tile + 2x output tile) and by _TILE_N_CAP."""
    per_node = 2 * (d_in * x_itemsize + d_out * out_itemsize)
    cap = vmem_budget_bytes // max(per_node, 1)
    cap = max(8, (cap // 8) * 8)
    cap = min(cap, _TILE_N_CAP)
    if n > cap:
        return cap                      # grid >= 2 automatically
    if n >= _SPLIT_MIN_N:
        # A single tile would cover N: split in two so the "parallel" grid axis
        # shards across v7x's two TensorCores (near-free extra step on v5e/v6e).
        half = (((n + 1) // 2) + 7) // 8 * 8
        return min(half, cap)
    return n                            # small N: one full-extent block


def node_encoder_forward(x, weight, bias, *, tile_n=None,
                         compute_dtype=jnp.float32, out_dtype=None):
    """NodeEncoder forward: y = x @ weight.T + bias.

    x: [N, d_in]; weight: [d_out, d_in] (PyTorch nn.Linear layout); bias: [d_out].
    compute_dtype: f32 (default, exact nn.Linear semantics) or bf16 (MXU-friendly;
      makes no difference to HBM traffic since x streams at its native dtype).
    out_dtype: defaults to x.dtype; bf16 halves the dominant output HBM stream.
    """
    n, d_in = x.shape
    d_out, d_in_w = weight.shape
    assert d_in_w == d_in and bias.shape == (d_out,)
    out_dtype = x.dtype if out_dtype is None else out_dtype

    # Tiny, one-time parameter prep (a few KiB): transposed weight + f32 bias row,
    # both VMEM-resident across all grid steps. x / y are NOT touched here.
    w_t = weight.T.astype(compute_dtype)                # (d_in, d_out)
    b_row = bias.astype(jnp.float32).reshape(1, d_out)  # (1, d_out)

    vmem_budget, vmem_limit = _gen_aware_vmem()
    if tile_n is None:
        tile_n = _choose_tile_n(n, d_in, d_out,
                                jnp.dtype(x.dtype).itemsize,
                                jnp.dtype(out_dtype).itemsize,
                                vmem_budget)
    tile_n = min(tile_n, n)
    if tile_n < n:
        tile_n = max(8, (tile_n // 8) * 8)  # sublane-axis divisibility for partial blocks

    grid = (pl.cdiv(n, tile_n),)            # ragged N: Pallas masks the partial last block

    y = pl.pallas_call(
        _linear_kernel,
        out_shape=jax.ShapeDtypeStruct((n, d_out), out_dtype),
        grid_spec=pltpu.PrefetchScalarGridSpec(
            num_scalar_prefetch=0,
            grid=grid,
            in_specs=[
                pl.BlockSpec((d_in, d_out), lambda i: (0, 0)),    # resident W.T
                pl.BlockSpec((1, d_out), lambda i: (0, 0)),       # resident bias row
                pl.BlockSpec((tile_n, d_in), lambda i: (i, 0)),   # streamed x tile
            ],
            out_specs=pl.BlockSpec((tile_n, d_out), lambda i: (i, 0)),
        ),
        compiler_params=pltpu.CompilerParams(
            dimension_semantics=("parallel",),
            vmem_limit_bytes=vmem_limit,
        ),
    )(w_t, b_row, x)
    return y


if __name__ == "__main__":
    key = jax.random.PRNGKey(0)
    k_x, k_w, k_b = jax.random.split(key, 3)

    # Small shapes consistent with the module: N nodes, input_dim -> embedding_dim.
    N, input_dim, embedding_dim = 8, 16, 32

    x = jax.random.normal(k_x, (N, input_dim), dtype=jnp.float32)
    # PyTorch-layout Linear parameters: weight [out, in], bias [out].
    weight = jax.random.normal(k_w, (embedding_dim, input_dim), dtype=jnp.float32) * 0.1
    bias = jax.random.normal(k_b, (embedding_dim,), dtype=jnp.float32) * 0.1

    out = node_encoder_forward(x, weight, bias)
    jax.block_until_ready(out)

    # f32 nn.Linear reference (default compute_dtype is f32; tolerance covers the
    # MXU's internal matmul precision).
    ref = x @ weight.T + bias

    assert out.shape == (N, embedding_dim)
    assert out.dtype == x.dtype
    assert jnp.allclose(out, ref, atol=2e-2, rtol=2e-2), "mismatch vs f32 nn.Linear reference"

    print("KERNEL_OK")
</pallas_src>

<mosaic_0001>
module attributes {stable_mosaic.version = 11 : i64} {
  func.func @_linear_kernel(%arg0: i32, %arg1: memref<16x32xf32, #tpu.memory_space<vmem>>, %arg2: memref<1x32xf32, #tpu.memory_space<vmem>>, %arg3: memref<8x16xf32, #tpu.memory_space<vmem>>, %arg4: memref<8x32xf32, #tpu.memory_space<vmem>>) attributes {dimension_semantics = [#tpu.dimension_semantics<parallel>], iteration_bounds = array<i64: 1>, scalar_prefetch = 0 : i64, scratch_operands = 0 : i64, tpu.core_type = #tpu.core_type<tc>, window_params = [{pipeline_mode = #tpu.pipeline_mode<synchronous>, transform_indices = @transform_0, window_bounds = array<i64: 16, 32>}, {pipeline_mode = #tpu.pipeline_mode<synchronous>, transform_indices = @transform_1, window_bounds = array<i64: 1, 32>}, {transform_indices = @transform_2, window_bounds = array<i64: 8, 16>}, {transform_indices = @transform_3, window_bounds = array<i64: 8, 32>}]} {
    %c0 = arith.constant 0 : index
    %c0_0 = arith.constant 0 : index
    %0 = vector.load %arg3[%c0, %c0_0] : memref<8x16xf32, #tpu.memory_space<vmem>>, vector<8x16xf32>
    %c0_1 = arith.constant 0 : index
    %c0_2 = arith.constant 0 : index
    %1 = vector.load %arg1[%c0_1, %c0_2] : memref<16x32xf32, #tpu.memory_space<vmem>>, vector<16x32xf32>
    %cst = arith.constant dense<0.000000e+00> : vector<8x32xf32>
    %2 = tpu.matmul %0, %1, %cst {dimension_numbers = #tpu.dot_dimension_numbers<[1], [0], [0], [1], [0, 0, 1, 1], [], []>} : vector<8x16xf32>, vector<16x32xf32>, vector<8x32xf32> -> vector<8x32xf32>
    %c0_3 = arith.constant 0 : index
    %c0_4 = arith.constant 0 : index
    %3 = vector.load %arg2[%c0_3, %c0_4] : memref<1x32xf32, #tpu.memory_space<vmem>>, vector<1x32xf32>
    %4 = vector.broadcast %3 : vector<1x32xf32> to vector<8x32xf32>
    %5 = arith.addf %2, %4 : vector<8x32xf32>
    %c0_5 = arith.constant 0 : index
    %c0_6 = arith.constant 0 : index
    %6 = vector.load %arg4[%c0_5, %c0_6] : memref<8x32xf32, #tpu.memory_space<vmem>>, vector<8x32xf32>
    tpu.vector_store %arg4[%c0_5, %c0_6], %5 {strides = array<i32>} : memref<8x32xf32, #tpu.memory_space<vmem>>, vector<8x32xf32>,
    return
  }
  func.func @transform_0(%arg0: i32) -> (i32, i32) {
    %c0_i32 = arith.constant 0 : i32
    %c0_i32_0 = arith.constant 0 : i32
    %c0_i32_1 = arith.constant 0 : i32
    return %c0_i32, %c0_i32_0 : i32, i32
  }
  func.func @transform_1(%arg0: i32) -> (i32, i32) {
    %c0_i32 = arith.constant 0 : i32
    %c0_i32_0 = arith.constant 0 : i32
    %c0_i32_1 = arith.constant 0 : i32
    return %c0_i32, %c0_i32_0 : i32, i32
  }
  func.func @transform_2(%arg0: i32) -> (i32, i32) {
    %c0_i32 = arith.constant 0 : i32
    %c0_i32_0 = arith.constant 0 : i32
    return %arg0, %c0_i32 : i32, i32
  }
  func.func @transform_3(%arg0: i32) -> (i32, i32) {
    %c0_i32 = arith.constant 0 : i32
    %c0_i32_0 = arith.constant 0 : i32
    return %arg0, %c0_i32 : i32, i32
  }
}

</mosaic_0001>

<llo_original>
// kernel: tpu_custom_call.1
$region0: #{tpu_custom_call.1}
  #allocation0 [shape = 'u32[]', space=smem, size = 0x4, offset = 0x4, fixed_abs, tag = 'smem constant byte address 0x4 - core index']
  #allocation1 [shape = 'u32[144,128]{1,0:T(1,128)}', space=vmem, size = 0x12000, scoped, tag = 'internal scratch']
  %s0 = inlined_call_operand.hbm [shape: f32[16,32], index: 0, kind: input, shape index: {}]
  %s1 = inlined_call_operand.vmem [shape: f32[1,32], index: 1, kind: input, shape index: {}]
  %s2 = inlined_call_operand.hbm [shape: f32[8,16], index: 2, kind: input, shape index: {}]
  %s3 = inlined_call_operand.hbm [shape: f32[8,32], index: 3, kind: output, shape index: {}]
  %s4 = sld [smem:[#allocation0]]
  $region30: #{tpu_custom_call.1} parent=0
    _
  %s6 = ssub.s32 1, %s4
  %s7 = scalar_select 0, %s6, %s4
  $region1: #{tpu_custom_call.1} parent=0
    #allocation2 [shape = 'u8[8192]{0}', space=vmem, size = 0x2000, scoped, tag = 'input window, operand 0, single buffered']
    #allocation3 [shape = 's32[1]{0}', space=sflag, size = 0x4, scoped, tag = 'scoped memory for tpu_custom_call.1']
    #allocation4 [shape = 's32[1]{0}', space=sflag, size = 0x4, scoped, tag = 'scoped memory for tpu_custom_call.1']
    #allocation5 [shape = 'u8[4096]{0}', space=vmem, size = 0x1000, scoped, tag = 'input window, operand 2, single buffered']
    #allocation6 [shape = 's32[1]{0}', space=sflag, size = 0x4, scoped, tag = 'scoped memory for tpu_custom_call.1']
    #allocation7 [shape = 'u8[4096]{0}', space=vmem, size = 0x1000, scoped, tag = 'output window, operand 0, single buffered']
    %8 = vsyncpa [#allocation3], 0
    %9 = vsyncpa [#allocation6], 0
    %10 = vsyncpa [#allocation4], 0
    // Predicated region
    $region2: #{tpu_custom_call.1} parent=1 // pred_check
      _
    $region3: #{tpu_custom_call.1} parent=1 // pred_check_branch
      %12 = sbr.rel (0) target = $region5
    $region4: #{tpu_custom_call.1} parent=1 // pred_region
      %s14 = ssub.s32 256, 256
      %15 = vsyncadd [#allocation3], %s14
      %s16 = sshll.u32 [#allocation2], 4
      %s17 = int_to_ptr.vmem [resolvable:$true] %s16
      %22 = dma.hbm_to_vmem [thread:$0]  %s0, 256, %s17, [#allocation3], 128, 128, 8
    $region5: #{tpu_custom_call.1} parent=1 // pred_fallthru
      _
    // Predicated region
    $region6: #{tpu_custom_call.1} parent=1 // pred_check
      _
    $region7: #{tpu_custom_call.1} parent=1 // pred_check_branch
      %24 = sbr.rel (0) target = $region9
    $region8: #{tpu_custom_call.1} parent=1 // pred_region
      _
    $region9: #{tpu_custom_call.1} parent=1 // pred_fallthru
      _
    // Predicated region
    $region10: #{tpu_custom_call.1} parent=1 // pred_check
      _
    $region11: #{tpu_custom_call.1} parent=1 // pred_check_branch
      %26 = sbr.rel (0) target = $region13
    $region12: #{tpu_custom_call.1} parent=1 // pred_region
      %s28 = ssub.s32 128, 128
      %29 = vsyncadd [#allocation6], %s28
      %s31 = sshll.u32 [#allocation5], 4
      %s32 = int_to_ptr.vmem [resolvable:$true] %s31
      %34 = dma.hbm_to_vmem [thread:$0]  %s2, 128, %s32, [#allocation6]
    $region13: #{tpu_custom_call.1} parent=1 // pred_fallthru
      _
    // Predicated region
    $region14: #{tpu_custom_call.1} parent=1 // pred_check
      _
    $region15: #{tpu_custom_call.1} parent=1 // pred_check_branch
      %36 = sbr.rel (0) target = $region17
    $region16: #{tpu_custom_call.1} parent=1 // pred_region
      %37 = dma.done [#allocation3], 256
    $region17: #{tpu_custom_call.1} parent=1 // pred_fallthru
      _
    // Predicated region
    $region18: #{tpu_custom_call.1} parent=1 // pred_check
      _
    $region19: #{tpu_custom_call.1} parent=1 // pred_check_branch
      %39 = sbr.rel (0) target = $region21
    $region20: #{tpu_custom_call.1} parent=1 // pred_region
      %40 = dma.done [#allocation6], 128
    $region21: #{tpu_custom_call.1} parent=1 // pred_fallthru
      _
    %v41 = vld [vmem:[#allocation5] sm:$0xff]
    %v42 = vld [vmem:[#allocation2] sm:$0xff]
    %v43 = vld [vmem:[#allocation2 + $0x8] sm:$0xff]
    %v44 = vld [vmem:[%s1] sm:$0x1]
    %v46 = vlaneseq
    %v47 = vshrl.u32 %v46, 7
    %v48 = vsub.s32 0, %v47
    %v49 = vrot.slane %v44, %v48
    %vm51 = vcmask 130048
    %v53 = vsel %vm51, %v41, 0
    %55 = vmatprep.subr.mxu0 0.0
    %56 = vmatpush1.msra.mxu0 %v42
    %57 = vmatprep.subr.mxu0 0.0
    %58 = vmatpush1.msra.mxu0 %v43
    %59 = vmatprep.subr.mxu0 0.0
    %60 = vmatpush1.msra.mxu0 0.0
    %61 = vmatprep.subr.mxu0 0.0
    %62 = vmatpush1.msra.mxu0 0.0
    %63 = vmatprep.subr.mxu0 0.0
    %64 = vmatpush1.msra.mxu0 0.0
    %65 = vmatprep.subr.mxu0 0.0
    %66 = vmatpush1.msra.mxu0 0.0
    %67 = vmatprep.subr.mxu0 0.0
    %68 = vmatpush1.msra.mxu0 0.0
    %69 = vmatprep.subr.mxu0 0.0
    %70 = vmatpush1.msra.mxu0 0.0
    %71 = vmatprep.subr.mxu0 0.0
    %72 = vmatpush1.msra.mxu0 0.0
    %73 = vmatprep.subr.mxu0 0.0
    %74 = vmatpush1.msra.mxu0 0.0
    %75 = vmatprep.subr.mxu0 0.0
    %76 = vmatpush1.msra.mxu0 0.0
    %77 = vmatprep.subr.mxu0 0.0
    %78 = vmatpush1.msra.mxu0 0.0
    %79 = vmatprep.subr.mxu0 0.0
    %80 = vmatpush1.msra.mxu0 0.0
    %81 = vmatprep.subr.mxu0 0.0
    %82 = vmatpush1.msra.mxu0 0.0
    %83 = vmatprep.subr.mxu0 0.0
    %84 = vmatpush1.msra.mxu0 0.0
    %85 = vmatprep.subr.mxu0 0.0
    %86 = vmatpush1.msra.mxu0 0.0
    %87 = vmatprep.subr.mxu0 0.0
    %88 = vmatpush1.msra.mxu0 0.0
    %89 = vmatprep.subr.mxu0 0.0
    %90 = vmatpush1.msra.mxu0 0.0
    %91 = vmatprep.subr.mxu0 0.0
    %92 = vmatpush1.msra.mxu0 0.0
    %93 = vmatprep.subr.mxu0 0.0
    %94 = vmatpush1.msra.mxu0 0.0
    %95 = vmatprep.subr.mxu0 0.0
    %96 = vmatpush1.msra.mxu0 0.0
    %97 = vmatprep.subr.mxu0 0.0
    %98 = vmatpush1.msra.mxu0 0.0
    %99 = vmatprep.subr.mxu0 0.0
    %100 = vmatpush1.msra.mxu0 0.0
    %101 = vmatprep.subr.mxu0 0.0
    %102 = vmatpush1.msra.mxu0 0.0
    %103 = vmatprep.subr.mxu0 0.0
    %104 = vmatpush1.msra.mxu0 0.0
    %105 = vmatprep.subr.mxu0 0.0
    %106 = vmatpush1.msra.mxu0 0.0
    %107 = vmatprep.subr.mxu0 0.0
    %108 = vmatpush1.msra.mxu0 0.0
    %109 = vmatprep.subr.mxu0 0.0
    %110 = vmatpush1.msra.mxu0 0.0
    %111 = vmatprep.subr.mxu0 0.0
    %112 = vmatpush1.msra.mxu0 0.0
    %113 = vmatprep.subr.mxu0 0.0
    %114 = vmatpush1.msra.mxu0 0.0
    %115 = vmatprep.subr.mxu0 0.0
    %116 = vmatpush1.msra.mxu0 0.0
    %117 = vmatprep.subr.mxu0 0.0
    %118 = vmatpush1.msra.mxu0 0.0
    %119 = vmatprep.mubr.f32.mxu0 0.0
    %120 = vmatmul.mubr.f32.gmra.mrb[0].mxu0 %v53
    %v121 = vpop.f32.mrb[0].mxu0
    %v122 = vadd.f32 %v49, %v121
    %v123 = vpop.f32.mrb[0].mxu0
    %124 = vdwg.mxu0
    %vm125 = vcmask 261120
    %126 = vst.msk [vmem:[#allocation7] sm:$0xff] %vm125, %v122
    // Predicated region
    $region22: #{tpu_custom_call.1} parent=1 // pred_check
      _
    $region23: #{tpu_custom_call.1} parent=1 // pred_check_branch
      %128 = sbr.rel (0) target = $region25
    $region24: #{tpu_custom_call.1} parent=1 // pred_region
      %s130 = ssub.s32 128, 128
      %131 = vsyncadd [#allocation4], %s130
      %s133 = sshll.u32 [#allocation7], 4
      %s134 = int_to_ptr.vmem [resolvable:$true] %s133
      %136 = dma.vmem_to_hbm [thread:$0]  %s134, 128, %s3, [#allocation4]
    $region25: #{tpu_custom_call.1} parent=1 // pred_fallthru
      _
    // Predicated region
    $region26: #{tpu_custom_call.1} parent=1 // pred_check
      _
    $region27: #{tpu_custom_call.1} parent=1 // pred_check_branch
      %138 = sbr.rel (0) target = $region29
    $region28: #{tpu_custom_call.1} parent=1 // pred_region
      %139 = dma.done [#allocation4], 128
    $region29: #{tpu_custom_call.1} parent=1 // pred_fallthru
      _
    %140 = vsyncpa [#allocation3], 1
    %141 = vsyncpa [#allocation6], 1
    %142 = vsyncpa [#allocation4], 1

</llo_original>
